<compile_context>
chip_gen: v5e
topology: v5e:2x2
jax: 0.10.0
libtpu: 0.0.40
codegen_flags: <defaults>
</compile_context>

<pallas_src>
import functools

import jax
import jax.numpy as jnp
from jax import lax
from jax.experimental import pallas as pl
from jax.experimental.pallas import tpu as pltpu

NEG_SLOPE = 0.01  # F.leaky_relu default


def _round_up(n, m):
    return ((n + m - 1) // m) * m


def _leaky_relu(x):
    return jnp.where(x > 0, x, NEG_SLOPE * x)


# ----------------------------- Pallas kernel ------------------------------- #
def _gnn3_fused_kernel(a_ref, x_ref, slab_ref, o_ref, *,
                       t_past, t_future, temp_c, n_mid, layout):
    """Fused GNN3 rollout: all layers and all T_future steps in one kernel.

    a_ref    : [Np, Np]   dense normalized adjacency (gcn_norm, self-loops)
    x_ref    : [Np, T_past] initial node features
    slab_ref : one packed slab holding every (folded / packed) weight & bias;
               unpacked once via static slices (layout is static metadata).
    o_ref    : [Np, T_future]
    """
    f32 = jnp.float32
    a = a_ref[...]
    x0 = x_ref[...]
    slab = slab_ref[...]

    def piece(name):
        r, c0, nc = layout[name]
        return slab[:r, c0:c0 + nc]

    # packed weights (built host-side):
    #   wx      = [diff@w0 | diff@w2p0 | shift]      rows = t_past
    #   stage_j = [w_mid_j | w2p_{j+1}]              rows = hidden
    #   wlast   = w2p_{n_mid+1}                      rows = hidden
    wx = piece("wx")
    stages = [piece(f"stage{j}") for j in range(n_mid)]
    wlast = piece("wlast")
    w3 = piece("w3")
    b0 = piece("b0")
    bmids = [piece(f"bmid{j}") for j in range(n_mid)]
    b2 = piece("b2")
    b3 = piece("b3")

    lane_t = lax.broadcasted_iota(jnp.int32, (1, t_past), 1)
    lane_f = lax.broadcasted_iota(jnp.int32, (1, t_future), 1)

    y_tm0 = x0[:, t_past - 1:t_past]                 # static lane slice (no MXU)
    y_all0 = jnp.zeros((x0.shape[0], t_future), f32)

    def step(t, carry):
        x_init, y_tm, y_all = carry
        # One wide matmul produces x_mod@W0, x_mod@W2p0 and the shifted x_init.
        xw = jnp.dot(x_init, wx, preferred_element_type=f32)
        n_hid0 = xw.shape[1] - temp_c - t_past
        xw0 = xw[:, :n_hid0]
        xw2 = xw[:, n_hid0:n_hid0 + temp_c]
        x_shift = xw[:, n_hid0 + temp_c:]            # == [x_init[:,1:], 0]

        # conv0
        h = _leaky_relu(jnp.dot(a, xw0, preferred_element_type=f32) + b0)
        # middle convs; each hidden activation also feeds its W2 row-split.
        for j in range(n_mid):
            hw = jnp.dot(h, stages[j], preferred_element_type=f32)
            split = hw.shape[1] - temp_c
            xw2 = xw2 + hw[:, split:]
            h = _leaky_relu(
                jnp.dot(a, hw[:, :split], preferred_element_type=f32) + bmids[j])
        xw2 = xw2 + jnp.dot(h, wlast, preferred_element_type=f32)

        # conv[-2] on temp = concat(parts)  (xw2 already = temp @ W2)
        x_temp = _leaky_relu(jnp.dot(a, xw2, preferred_element_type=f32) + b2)
        # conv[-1] (no activation), residual on previous prediction
        delta = jnp.dot(a, jnp.dot(x_temp, w3, preferred_element_type=f32),
                        preferred_element_type=f32) + b3
        y_t = y_tm + delta                           # [Np, 1]

        # write output column t (masked accumulate, VPU)
        y_all = y_all + y_t * (lane_f == t).astype(f32)
        # x_init <- concat([x_init[:,1:], y_t]) : select over the shifted copy
        x_new = jnp.where(lane_t == t_past - 1, y_t, x_shift)
        return (x_new, y_t, y_all)

    _, _, y_all = lax.fori_loop(0, t_future, step, (x0, y_tm0, y_all0),
                                unroll=True)
    o_ref[...] = y_all.astype(o_ref.dtype)


# ----------------------------- plain-JAX glue ------------------------------ #
def gcn_norm_dense(edge_index, edge_weight, num_nodes):
    """Dense normalized adjacency matching PyG gcn_norm (self-loops, sym norm)."""
    src, dst = edge_index[0], edge_index[1]
    loop = jnp.arange(num_nodes, dtype=src.dtype)
    src = jnp.concatenate([src, loop])
    dst = jnp.concatenate([dst, loop])
    w = jnp.concatenate([edge_weight, jnp.ones((num_nodes,), edge_weight.dtype)])
    deg = jnp.zeros((num_nodes,), w.dtype).at[dst].add(w)
    dinv = jnp.where(deg > 0, 1.0 / jnp.sqrt(deg), 0.0)
    norm = dinv[src] * w * dinv[dst]
    # message from src aggregated at dst -> out = A_hat @ x, A_hat[dst, src]
    a_hat = jnp.zeros((num_nodes, num_nodes), w.dtype).at[dst, src].add(norm)
    return a_hat


def gnn3_forward(x_init, t_future, a_hat, params):
    """GNN3.forward (include_t=False), one fused pallas_call. Returns [N, T_future]."""
    f32 = jnp.float32
    n, t_past = x_init.shape
    assert t_past >= 2, "include_t=False rollout needs T_past >= 2"
    np_ = _round_up(n, 8)  # f32 sublane; other dims stay exact (full-array blocks)

    (w0, b0) = params[0]
    mid_params = [(jnp.asarray(w, f32), jnp.asarray(b, f32))
                  for (w, b) in params[1:-2]]
    (w2, b2) = params[-2]
    (w3, b3) = params[-1]
    w0 = jnp.asarray(w0, f32); b0 = jnp.asarray(b0, f32)
    w2 = jnp.asarray(w2, f32); b2 = jnp.asarray(b2, f32)
    w3 = jnp.asarray(w3, f32); b3 = jnp.asarray(b3, f32)
    n_mid = len(mid_params)
    temp_c = w2.shape[0]

    # Host-side selector matrices; folded into the weight slab below.
    rr = jnp.arange(t_past)[:, None]
    cd = jnp.arange(t_past - 1)[None, :]
    diff = (rr == cd + 1).astype(f32) - (rr == cd).astype(f32)  # x@diff = x[:,1:]-x[:,:-1]
    cs = jnp.arange(t_past)[None, :]
    shift = (rr == cs + 1).astype(f32)                          # x@shift = [x[:,1:], 0]

    # Row-split W2 to match the concat order [x_mod, conv0_out, mid outs...].
    split_sizes = [t_past - 1, w0.shape[1]] + [w.shape[1] for (w, _) in mid_params]
    assert sum(split_sizes) == temp_c
    w2_parts, off = [], 0
    for s in split_sizes:
        w2_parts.append(w2[off:off + s, :])
        off += s

    # Fold diff into everything that multiplies x_mod, pack weights sharing an
    # activation into one wide operand, and ride the shift matrix along the
    # x_init matmul.
    pieces = [("wx", jnp.concatenate([diff @ w0, diff @ w2_parts[0], shift], axis=1))]
    for j in range(n_mid):
        pieces.append((f"stage{j}",
                       jnp.concatenate([mid_params[j][0], w2_parts[j + 1]], axis=1)))
    pieces.append(("wlast", w2_parts[n_mid + 1]))
    pieces.append(("w3", w3))
    pieces.append(("b0", b0.reshape(1, -1)))
    for j in range(n_mid):
        pieces.append((f"bmid{j}", mid_params[j][1].reshape(1, -1)))
    pieces.append(("b2", b2.reshape(1, -1)))
    pieces.append(("b3", b3.reshape(1, -1)))

    # One packed slab -> a single input DMA instead of ~13.
    rows = _round_up(max(p.shape[0] for _, p in pieces), 8)
    layout, cols, coff = {}, [], 0
    for name, p in pieces:
        layout[name] = (p.shape[0], coff, p.shape[1])
        cols.append(jnp.pad(p.astype(f32), ((0, rows - p.shape[0]), (0, 0))))
        coff += p.shape[1]
    slab = jnp.concatenate(cols, axis=1)

    a_p = jnp.pad(a_hat.astype(f32), ((0, np_ - n), (0, np_ - n)))
    x_p = jnp.pad(x_init.astype(f32), ((0, np_ - n), (0, 0)))

    kernel = functools.partial(
        _gnn3_fused_kernel, t_past=t_past, t_future=t_future,
        temp_c=temp_c, n_mid=n_mid, layout=layout)

    inputs = [a_p, x_p, slab]
    out_p = pl.pallas_call(
        kernel,
        out_shape=jax.ShapeDtypeStruct((np_, t_future), jnp.float32),
        grid=(1,),
        in_specs=[pl.BlockSpec(v.shape, lambda i: (0, 0)) for v in inputs],
        out_specs=pl.BlockSpec((np_, t_future), lambda i: (0, 0)),
        compiler_params=pltpu.CompilerParams(
            dimension_semantics=("arbitrary",)),
    )(*inputs)
    return out_p[:n, :]


# --------------------------------- main ------------------------------------ #
if __name__ == "__main__":
    key = jax.random.PRNGKey(0)

    N = 16             # nodes
    in_channels = 5    # == T_past (data.x is [N, T_past])
    hidden = 8
    num_layers = 4
    T_future = 3       # == data.y.shape[1]

    # deterministic node features
    kx, kw = jax.random.split(key)
    x = jax.random.normal(kx, (N, in_channels), jnp.float32)

    # bidirectional ring graph (no self-loops), positive edge weights
    src_f = jnp.arange(N, dtype=jnp.int32)
    dst_f = (src_f + 1) % N
    edge_index = jnp.stack(
        [jnp.concatenate([src_f, dst_f]), jnp.concatenate([dst_f, src_f])])
    edge_weight = 0.1 + jnp.abs(
        jax.random.normal(kw, (edge_index.shape[1],), jnp.float32))

    # deterministic parameters (glorot-uniform weights, zero biases, as in PyG)
    temp_c = hidden * (num_layers - 2) + in_channels - 1
    dims = [(in_channels - 1, hidden), (hidden, hidden),
            (temp_c, temp_c), (temp_c, 1)]
    params = []
    for i, (fi, fo) in enumerate(dims):
        wk = jax.random.fold_in(key, 100 + i)
        scale = (6.0 / (fi + fo)) ** 0.5
        W = jax.random.uniform(wk, (fi, fo), jnp.float32, -scale, scale)
        b = jnp.zeros((fo,), jnp.float32)
        params.append((W, b))

    a_hat = gcn_norm_dense(edge_index, edge_weight, N)

    y_pred = gnn3_forward(x, T_future, a_hat, params)
    y_pred = jax.block_until_ready(y_pred)
    assert y_pred.shape == (N, T_future)
    print("KERNEL_OK")
</pallas_src>

<mosaic_0001>
module attributes {stable_mosaic.version = 11 : i64} {
  func.func @_gnn3_fused_kernel(%arg0: i32, %arg1: memref<16x16xf32, #tpu.memory_space<vmem>>, %arg2: memref<16x5xf32, #tpu.memory_space<vmem>>, %arg3: memref<24x119xf32, #tpu.memory_space<vmem>>, %arg4: memref<16x3xf32, #tpu.memory_space<vmem>>) attributes {dimension_semantics = [#tpu.dimension_semantics<arbitrary>], iteration_bounds = array<i64: 1>, scalar_prefetch = 0 : i64, scratch_operands = 0 : i64, tpu.core_type = #tpu.core_type<tc>, window_params = [{pipeline_mode = #tpu.pipeline_mode<synchronous>, transform_indices = @transform_0, window_bounds = array<i64: 16, 16>}, {pipeline_mode = #tpu.pipeline_mode<synchronous>, transform_indices = @transform_1, window_bounds = array<i64: 16, 5>}, {pipeline_mode = #tpu.pipeline_mode<synchronous>, transform_indices = @transform_2, window_bounds = array<i64: 24, 119>}, {pipeline_mode = #tpu.pipeline_mode<synchronous>, transform_indices = @transform_3, window_bounds = array<i64: 16, 3>}]} {
    %c0 = arith.constant 0 : index
    %c0_0 = arith.constant 0 : index
    %0 = vector.load %arg1[%c0, %c0_0] : memref<16x16xf32, #tpu.memory_space<vmem>>, vector<16x16xf32>
    %c0_1 = arith.constant 0 : index
    %c0_2 = arith.constant 0 : index
    %1 = vector.load %arg2[%c0_1, %c0_2] : memref<16x5xf32, #tpu.memory_space<vmem>>, vector<16x5xf32>
    %c0_3 = arith.constant 0 : index
    %c0_4 = arith.constant 0 : index
    %2 = vector.load %arg3[%c0_3, %c0_4] : memref<24x119xf32, #tpu.memory_space<vmem>>, vector<24x119xf32>
    %3 = vector.extract_strided_slice %2 {offsets = [0, 0], sizes = [5, 33], strides = [1, 1]} : vector<24x119xf32> to vector<5x33xf32>
    %4 = vector.extract_strided_slice %2 {offsets = [0, 33], sizes = [8, 28], strides = [1, 1]} : vector<24x119xf32> to vector<8x28xf32>
    %5 = vector.extract_strided_slice %2 {offsets = [0, 61], sizes = [8, 20], strides = [1, 1]} : vector<24x119xf32> to vector<8x20xf32>
    %6 = vector.extract_strided_slice %2 {offsets = [0, 81], sizes = [20, 1], strides = [1, 1]} : vector<24x119xf32> to vector<20x1xf32>
    %7 = vector.extract_strided_slice %2 {offsets = [0, 82], sizes = [1, 8], strides = [1, 1]} : vector<24x119xf32> to vector<1x8xf32>
    %8 = vector.extract_strided_slice %2 {offsets = [0, 90], sizes = [1, 8], strides = [1, 1]} : vector<24x119xf32> to vector<1x8xf32>
    %9 = vector.extract_strided_slice %2 {offsets = [0, 98], sizes = [1, 20], strides = [1, 1]} : vector<24x119xf32> to vector<1x20xf32>
    %10 = vector.extract_strided_slice %2 {offsets = [0, 118], sizes = [1, 1], strides = [1, 1]} : vector<24x119xf32> to vector<1x1xf32>
    %11 = tpu.iota {dimensions = array<i32: 1>} : vector<1x5xi32>
    %12 = tpu.iota {dimensions = array<i32: 1>} : vector<1x3xi32>
    %13 = vector.extract_strided_slice %1 {offsets = [0, 4], sizes = [16, 1], strides = [1, 1]} : vector<16x5xf32> to vector<16x1xf32>
    %cst = arith.constant 0.000000e+00 : f32
    %14 = vector.broadcast %cst : f32 to vector<16x3xf32>
    %c0_i32 = arith.constant 0 : i32
    %cst_5 = arith.constant dense<0.000000e+00> : vector<16x33xf32>
    %15 = tpu.matmul %1, %3, %cst_5 {dimension_numbers = #tpu.dot_dimension_numbers<[1], [0], [0], [1], [0, 0, 1, 1], [], []>} : vector<16x5xf32>, vector<5x33xf32>, vector<16x33xf32> -> vector<16x33xf32>
    %16 = vector.extract_strided_slice %15 {offsets = [0, 0], sizes = [16, 8], strides = [1, 1]} : vector<16x33xf32> to vector<16x8xf32>
    %17 = vector.extract_strided_slice %15 {offsets = [0, 8], sizes = [16, 20], strides = [1, 1]} : vector<16x33xf32> to vector<16x20xf32>
    %18 = vector.extract_strided_slice %15 {offsets = [0, 28], sizes = [16, 5], strides = [1, 1]} : vector<16x33xf32> to vector<16x5xf32>
    %cst_6 = arith.constant dense<0.000000e+00> : vector<16x8xf32>
    %19 = tpu.matmul %0, %16, %cst_6 {dimension_numbers = #tpu.dot_dimension_numbers<[1], [0], [0], [1], [0, 0, 1, 1], [], []>} : vector<16x16xf32>, vector<16x8xf32>, vector<16x8xf32> -> vector<16x8xf32>
    %20 = vector.broadcast %7 : vector<1x8xf32> to vector<16x8xf32>
    %21 = arith.addf %19, %20 : vector<16x8xf32>
    %cst_7 = arith.constant 0.000000e+00 : f32
    %22 = vector.broadcast %cst_7 : f32 to vector<16x8xf32>
    %23 = arith.cmpf ogt, %21, %22 : vector<16x8xf32>
    %cst_8 = arith.constant 0.00999999977 : f32
    %24 = vector.broadcast %cst_8 : f32 to vector<16x8xf32>
    %25 = arith.mulf %24, %21 : vector<16x8xf32>
    %26 = arith.select %23, %21, %25 : vector<16x8xi1>, vector<16x8xf32>
    %cst_9 = arith.constant dense<0.000000e+00> : vector<16x28xf32>
    %27 = tpu.matmul %26, %4, %cst_9 {dimension_numbers = #tpu.dot_dimension_numbers<[1], [0], [0], [1], [0, 0, 1, 1], [], []>} : vector<16x8xf32>, vector<8x28xf32>, vector<16x28xf32> -> vector<16x28xf32>
    %28 = vector.extract_strided_slice %27 {offsets = [0, 8], sizes = [16, 20], strides = [1, 1]} : vector<16x28xf32> to vector<16x20xf32>
    %29 = arith.addf %17, %28 : vector<16x20xf32>
    %30 = vector.extract_strided_slice %27 {offsets = [0, 0], sizes = [16, 8], strides = [1, 1]} : vector<16x28xf32> to vector<16x8xf32>
    %cst_10 = arith.constant dense<0.000000e+00> : vector<16x8xf32>
    %31 = tpu.matmul %0, %30, %cst_10 {dimension_numbers = #tpu.dot_dimension_numbers<[1], [0], [0], [1], [0, 0, 1, 1], [], []>} : vector<16x16xf32>, vector<16x8xf32>, vector<16x8xf32> -> vector<16x8xf32>
    %32 = vector.broadcast %8 : vector<1x8xf32> to vector<16x8xf32>
    %33 = arith.addf %31, %32 : vector<16x8xf32>
    %cst_11 = arith.constant 0.000000e+00 : f32
    %34 = vector.broadcast %cst_11 : f32 to vector<16x8xf32>
    %35 = arith.cmpf ogt, %33, %34 : vector<16x8xf32>
    %cst_12 = arith.constant 0.00999999977 : f32
    %36 = vector.broadcast %cst_12 : f32 to vector<16x8xf32>
    %37 = arith.mulf %36, %33 : vector<16x8xf32>
    %38 = arith.select %35, %33, %37 : vector<16x8xi1>, vector<16x8xf32>
    %cst_13 = arith.constant dense<0.000000e+00> : vector<16x20xf32>
    %39 = tpu.matmul %38, %5, %cst_13 {dimension_numbers = #tpu.dot_dimension_numbers<[1], [0], [0], [1], [0, 0, 1, 1], [], []>} : vector<16x8xf32>, vector<8x20xf32>, vector<16x20xf32> -> vector<16x20xf32>
    %40 = arith.addf %29, %39 : vector<16x20xf32>
    %cst_14 = arith.constant dense<0.000000e+00> : vector<16x20xf32>
    %41 = tpu.matmul %0, %40, %cst_14 {dimension_numbers = #tpu.dot_dimension_numbers<[1], [0], [0], [1], [0, 0, 1, 1], [], []>} : vector<16x16xf32>, vector<16x20xf32>, vector<16x20xf32> -> vector<16x20xf32>
    %42 = vector.broadcast %9 : vector<1x20xf32> to vector<16x20xf32>
    %43 = arith.addf %41, %42 : vector<16x20xf32>
    %cst_15 = arith.constant 0.000000e+00 : f32
    %44 = vector.broadcast %cst_15 : f32 to vector<16x20xf32>
    %45 = arith.cmpf ogt, %43, %44 : vector<16x20xf32>
    %cst_16 = arith.constant 0.00999999977 : f32
    %46 = vector.broadcast %cst_16 : f32 to vector<16x20xf32>
    %47 = arith.mulf %46, %43 : vector<16x20xf32>
    %48 = arith.select %45, %43, %47 : vector<16x20xi1>, vector<16x20xf32>
    %cst_17 = arith.constant dense<0.000000e+00> : vector<16x1xf32>
    %49 = tpu.matmul %48, %6, %cst_17 {dimension_numbers = #tpu.dot_dimension_numbers<[1], [0], [0], [1], [0, 0, 1, 1], [], []>} : vector<16x20xf32>, vector<20x1xf32>, vector<16x1xf32> -> vector<16x1xf32>
    %cst_18 = arith.constant dense<0.000000e+00> : vector<16x1xf32>
    %50 = tpu.matmul %0, %49, %cst_18 {dimension_numbers = #tpu.dot_dimension_numbers<[1], [0], [0], [1], [0, 0, 1, 1], [], []>} : vector<16x16xf32>, vector<16x1xf32>, vector<16x1xf32> -> vector<16x1xf32>
    %51 = vector.broadcast %10 : vector<1x1xf32> to vector<16x1xf32>
    %52 = arith.addf %50, %51 : vector<16x1xf32>
    %53 = arith.addf %13, %52 : vector<16x1xf32>
    %54 = vector.broadcast %c0_i32 : i32 to vector<1x3xi32>
    %55 = arith.cmpi eq, %12, %54 : vector<1x3xi32>
    %56 = arith.extui %55 : vector<1x3xi1> to vector<1x3xi32>
    %57 = arith.sitofp %56 : vector<1x3xi32> to vector<1x3xf32>
    %58 = vector.broadcast %53 : vector<16x1xf32> to vector<16x3xf32>
    %59 = vector.broadcast %57 : vector<1x3xf32> to vector<16x3xf32>
    %60 = arith.mulf %58, %59 : vector<16x3xf32>
    %61 = arith.addf %14, %60 : vector<16x3xf32>
    %c4_i32 = arith.constant 4 : i32
    %62 = vector.broadcast %c4_i32 : i32 to vector<1x5xi32>
    %63 = arith.cmpi eq, %11, %62 : vector<1x5xi32>
    %64 = vector.shape_cast %63 : vector<1x5xi1> to vector<1x5xi1>
    %65 = vector.broadcast %64 : vector<1x5xi1> to vector<16x5xi1>
    %66 = vector.shape_cast %53 : vector<16x1xf32> to vector<16x1xf32>
    %67 = vector.broadcast %66 : vector<16x1xf32> to vector<16x5xf32>
    %68 = arith.select %65, %67, %18 : vector<16x5xi1>, vector<16x5xf32>
    %c1_i32 = arith.constant 1 : i32
    %cst_19 = arith.constant dense<0.000000e+00> : vector<16x33xf32>
    %69 = tpu.matmul %68, %3, %cst_19 {dimension_numbers = #tpu.dot_dimension_numbers<[1], [0], [0], [1], [0, 0, 1, 1], [], []>} : vector<16x5xf32>, vector<5x33xf32>, vector<16x33xf32> -> vector<16x33xf32>
    %70 = vector.extract_strided_slice %69 {offsets = [0, 0], sizes = [16, 8], strides = [1, 1]} : vector<16x33xf32> to vector<16x8xf32>
    %71 = vector.extract_strided_slice %69 {offsets = [0, 8], sizes = [16, 20], strides = [1, 1]} : vector<16x33xf32> to vector<16x20xf32>
    %72 = vector.extract_strided_slice %69 {offsets = [0, 28], sizes = [16, 5], strides = [1, 1]} : vector<16x33xf32> to vector<16x5xf32>
    %cst_20 = arith.constant dense<0.000000e+00> : vector<16x8xf32>
    %73 = tpu.matmul %0, %70, %cst_20 {dimension_numbers = #tpu.dot_dimension_numbers<[1], [0], [0], [1], [0, 0, 1, 1], [], []>} : vector<16x16xf32>, vector<16x8xf32>, vector<16x8xf32> -> vector<16x8xf32>
    %74 = vector.broadcast %7 : vector<1x8xf32> to vector<16x8xf32>
    %75 = arith.addf %73, %74 : vector<16x8xf32>
    %cst_21 = arith.constant 0.000000e+00 : f32
    %76 = vector.broadcast %cst_21 : f32 to vector<16x8xf32>
    %77 = arith.cmpf ogt, %75, %76 : vector<16x8xf32>
    %cst_22 = arith.constant 0.00999999977 : f32
    %78 = vector.broadcast %cst_22 : f32 to vector<16x8xf32>
    %79 = arith.mulf %78, %75 : vector<16x8xf32>
    %80 = arith.select %77, %75, %79 : vector<16x8xi1>, vector<16x8xf32>
    %cst_23 = arith.constant dense<0.000000e+00> : vector<16x28xf32>
    %81 = tpu.matmul %80, %4, %cst_23 {dimension_numbers = #tpu.dot_dimension_numbers<[1], [0], [0], [1], [0, 0, 1, 1], [], []>} : vector<16x8xf32>, vector<8x28xf32>, vector<16x28xf32> -> vector<16x28xf32>
    %82 = vector.extract_strided_slice %81 {offsets = [0, 8], sizes = [16, 20], strides = [1, 1]} : vector<16x28xf32> to vector<16x20xf32>
    %83 = arith.addf %71, %82 : vector<16x20xf32>
    %84 = vector.extract_strided_slice %81 {offsets = [0, 0], sizes = [16, 8], strides = [1, 1]} : vector<16x28xf32> to vector<16x8xf32>
    %cst_24 = arith.constant dense<0.000000e+00> : vector<16x8xf32>
    %85 = tpu.matmul %0, %84, %cst_24 {dimension_numbers = #tpu.dot_dimension_numbers<[1], [0], [0], [1], [0, 0, 1, 1], [], []>} : vector<16x16xf32>, vector<16x8xf32>, vector<16x8xf32> -> vector<16x8xf32>
    %86 = vector.broadcast %8 : vector<1x8xf32> to vector<16x8xf32>
    %87 = arith.addf %85, %86 : vector<16x8xf32>
    %cst_25 = arith.constant 0.000000e+00 : f32
    %88 = vector.broadcast %cst_25 : f32 to vector<16x8xf32>
    %89 = arith.cmpf ogt, %87, %88 : vector<16x8xf32>
    %cst_26 = arith.constant 0.00999999977 : f32
    %90 = vector.broadcast %cst_26 : f32 to vector<16x8xf32>
    %91 = arith.mulf %90, %87 : vector<16x8xf32>
    %92 = arith.select %89, %87, %91 : vector<16x8xi1>, vector<16x8xf32>
    %cst_27 = arith.constant dense<0.000000e+00> : vector<16x20xf32>
    %93 = tpu.matmul %92, %5, %cst_27 {dimension_numbers = #tpu.dot_dimension_numbers<[1], [0], [0], [1], [0, 0, 1, 1], [], []>} : vector<16x8xf32>, vector<8x20xf32>, vector<16x20xf32> -> vector<16x20xf32>
    %94 = arith.addf %83, %93 : vector<16x20xf32>
    %cst_28 = arith.constant dense<0.000000e+00> : vector<16x20xf32>
    %95 = tpu.matmul %0, %94, %cst_28 {dimension_numbers = #tpu.dot_dimension_numbers<[1], [0], [0], [1], [0, 0, 1, 1], [], []>} : vector<16x16xf32>, vector<16x20xf32>, vector<16x20xf32> -> vector<16x20xf32>
    %96 = vector.broadcast %9 : vector<1x20xf32> to vector<16x20xf32>
    %97 = arith.addf %95, %96 : vector<16x20xf32>
    %cst_29 = arith.constant 0.000000e+00 : f32
    %98 = vector.broadcast %cst_29 : f32 to vector<16x20xf32>
    %99 = arith.cmpf ogt, %97, %98 : vector<16x20xf32>
    %cst_30 = arith.constant 0.00999999977 : f32
    %100 = vector.broadcast %cst_30 : f32 to vector<16x20xf32>
    %101 = arith.mulf %100, %97 : vector<16x20xf32>
    %102 = arith.select %99, %97, %101 : vector<16x20xi1>, vector<16x20xf32>
    %cst_31 = arith.constant dense<0.000000e+00> : vector<16x1xf32>
    %103 = tpu.matmul %102, %6, %cst_31 {dimension_numbers = #tpu.dot_dimension_numbers<[1], [0], [0], [1], [0, 0, 1, 1], [], []>} : vector<16x20xf32>, vector<20x1xf32>, vector<16x1xf32> -> vector<16x1xf32>
    %cst_32 = arith.constant dense<0.000000e+00> : vector<16x1xf32>
    %104 = tpu.matmul %0, %103, %cst_32 {dimension_numbers = #tpu.dot_dimension_numbers<[1], [0], [0], [1], [0, 0, 1, 1], [], []>} : vector<16x16xf32>, vector<16x1xf32>, vector<16x1xf32> -> vector<16x1xf32>
    %105 = vector.broadcast %10 : vector<1x1xf32> to vector<16x1xf32>
    %106 = arith.addf %104, %105 : vector<16x1xf32>
    %107 = arith.addf %53, %106 : vector<16x1xf32>
    %108 = vector.broadcast %c1_i32 : i32 to vector<1x3xi32>
    %109 = arith.cmpi eq, %12, %108 : vector<1x3xi32>
    %110 = arith.extui %109 : vector<1x3xi1> to vector<1x3xi32>
    %111 = arith.sitofp %110 : vector<1x3xi32> to vector<1x3xf32>
    %112 = vector.broadcast %107 : vector<16x1xf32> to vector<16x3xf32>
    %113 = vector.broadcast %111 : vector<1x3xf32> to vector<16x3xf32>
    %114 = arith.mulf %112, %113 : vector<16x3xf32>
    %115 = arith.addf %61, %114 : vector<16x3xf32>
    %c4_i32_33 = arith.constant 4 : i32
    %116 = vector.broadcast %c4_i32_33 : i32 to vector<1x5xi32>
    %117 = arith.cmpi eq, %11, %116 : vector<1x5xi32>
    %118 = vector.shape_cast %117 : vector<1x5xi1> to vector<1x5xi1>
    %119 = vector.broadcast %118 : vector<1x5xi1> to vector<16x5xi1>
    %120 = vector.shape_cast %107 : vector<16x1xf32> to vector<16x1xf32>
    %121 = vector.broadcast %120 : vector<16x1xf32> to vector<16x5xf32>
    %122 = arith.select %119, %121, %72 : vector<16x5xi1>, vector<16x5xf32>
    %c2_i32 = arith.constant 2 : i32
    %cst_34 = arith.constant dense<0.000000e+00> : vector<16x33xf32>
    %123 = tpu.matmul %122, %3, %cst_34 {dimension_numbers = #tpu.dot_dimension_numbers<[1], [0], [0], [1], [0, 0, 1, 1], [], []>} : vector<16x5xf32>, vector<5x33xf32>, vector<16x33xf32> -> vector<16x33xf32>
    %124 = vector.extract_strided_slice %123 {offsets = [0, 0], sizes = [16, 8], strides = [1, 1]} : vector<16x33xf32> to vector<16x8xf32>
    %125 = vector.extract_strided_slice %123 {offsets = [0, 8], sizes = [16, 20], strides = [1, 1]} : vector<16x33xf32> to vector<16x20xf32>
    %126 = vector.extract_strided_slice %123 {offsets = [0, 28], sizes = [16, 5], strides = [1, 1]} : vector<16x33xf32> to vector<16x5xf32>
    %cst_35 = arith.constant dense<0.000000e+00> : vector<16x8xf32>
    %127 = tpu.matmul %0, %124, %cst_35 {dimension_numbers = #tpu.dot_dimension_numbers<[1], [0], [0], [1], [0, 0, 1, 1], [], []>} : vector<16x16xf32>, vector<16x8xf32>, vector<16x8xf32> -> vector<16x8xf32>
    %128 = vector.broadcast %7 : vector<1x8xf32> to vector<16x8xf32>
    %129 = arith.addf %127, %128 : vector<16x8xf32>
    %cst_36 = arith.constant 0.000000e+00 : f32
    %130 = vector.broadcast %cst_36 : f32 to vector<16x8xf32>
    %131 = arith.cmpf ogt, %129, %130 : vector<16x8xf32>
    %cst_37 = arith.constant 0.00999999977 : f32
    %132 = vector.broadcast %cst_37 : f32 to vector<16x8xf32>
    %133 = arith.mulf %132, %129 : vector<16x8xf32>
    %134 = arith.select %131, %129, %133 : vector<16x8xi1>, vector<16x8xf32>
    %cst_38 = arith.constant dense<0.000000e+00> : vector<16x28xf32>
    %135 = tpu.matmul %134, %4, %cst_38 {dimension_numbers = #tpu.dot_dimension_numbers<[1], [0], [0], [1], [0, 0, 1, 1], [], []>} : vector<16x8xf32>, vector<8x28xf32>, vector<16x28xf32> -> vector<16x28xf32>
    %136 = vector.extract_strided_slice %135 {offsets = [0, 8], sizes = [16, 20], strides = [1, 1]} : vector<16x28xf32> to vector<16x20xf32>
    %137 = arith.addf %125, %136 : vector<16x20xf32>
    %138 = vector.extract_strided_slice %135 {offsets = [0, 0], sizes = [16, 8], strides = [1, 1]} : vector<16x28xf32> to vector<16x8xf32>
    %cst_39 = arith.constant dense<0.000000e+00> : vector<16x8xf32>
    %139 = tpu.matmul %0, %138, %cst_39 {dimension_numbers = #tpu.dot_dimension_numbers<[1], [0], [0], [1], [0, 0, 1, 1], [], []>} : vector<16x16xf32>, vector<16x8xf32>, vector<16x8xf32> -> vector<16x8xf32>
    %140 = vector.broadcast %8 : vector<1x8xf32> to vector<16x8xf32>
    %141 = arith.addf %139, %140 : vector<16x8xf32>
    %cst_40 = arith.constant 0.000000e+00 : f32
    %142 = vector.broadcast %cst_40 : f32 to vector<16x8xf32>
    %143 = arith.cmpf ogt, %141, %142 : vector<16x8xf32>
    %cst_41 = arith.constant 0.00999999977 : f32
    %144 = vector.broadcast %cst_41 : f32 to vector<16x8xf32>
    %145 = arith.mulf %144, %141 : vector<16x8xf32>
    %146 = arith.select %143, %141, %145 : vector<16x8xi1>, vector<16x8xf32>
    %cst_42 = arith.constant dense<0.000000e+00> : vector<16x20xf32>
    %147 = tpu.matmul %146, %5, %cst_42 {dimension_numbers = #tpu.dot_dimension_numbers<[1], [0], [0], [1], [0, 0, 1, 1], [], []>} : vector<16x8xf32>, vector<8x20xf32>, vector<16x20xf32> -> vector<16x20xf32>
    %148 = arith.addf %137, %147 : vector<16x20xf32>
    %cst_43 = arith.constant dense<0.000000e+00> : vector<16x20xf32>
    %149 = tpu.matmul %0, %148, %cst_43 {dimension_numbers = #tpu.dot_dimension_numbers<[1], [0], [0], [1], [0, 0, 1, 1], [], []>} : vector<16x16xf32>, vector<16x20xf32>, vector<16x20xf32> -> vector<16x20xf32>
    %150 = vector.broadcast %9 : vector<1x20xf32> to vector<16x20xf32>
    %151 = arith.addf %149, %150 : vector<16x20xf32>
    %cst_44 = arith.constant 0.000000e+00 : f32
    %152 = vector.broadcast %cst_44 : f32 to vector<16x20xf32>
    %153 = arith.cmpf ogt, %151, %152 : vector<16x20xf32>
    %cst_45 = arith.constant 0.00999999977 : f32
    %154 = vector.broadcast %cst_45 : f32 to vector<16x20xf32>
    %155 = arith.mulf %154, %151 : vector<16x20xf32>
    %156 = arith.select %153, %151, %155 : vector<16x20xi1>, vector<16x20xf32>
    %cst_46 = arith.constant dense<0.000000e+00> : vector<16x1xf32>
    %157 = tpu.matmul %156, %6, %cst_46 {dimension_numbers = #tpu.dot_dimension_numbers<[1], [0], [0], [1], [0, 0, 1, 1], [], []>} : vector<16x20xf32>, vector<20x1xf32>, vector<16x1xf32> -> vector<16x1xf32>
    %cst_47 = arith.constant dense<0.000000e+00> : vector<16x1xf32>
    %158 = tpu.matmul %0, %157, %cst_47 {dimension_numbers = #tpu.dot_dimension_numbers<[1], [0], [0], [1], [0, 0, 1, 1], [], []>} : vector<16x16xf32>, vector<16x1xf32>, vector<16x1xf32> -> vector<16x1xf32>
    %159 = vector.broadcast %10 : vector<1x1xf32> to vector<16x1xf32>
    %160 = arith.addf %158, %159 : vector<16x1xf32>
    %161 = arith.addf %107, %160 : vector<16x1xf32>
    %162 = vector.broadcast %c2_i32 : i32 to vector<1x3xi32>
    %163 = arith.cmpi eq, %12, %162 : vector<1x3xi32>
    %164 = arith.extui %163 : vector<1x3xi1> to vector<1x3xi32>
    %165 = arith.sitofp %164 : vector<1x3xi32> to vector<1x3xf32>
    %166 = vector.broadcast %161 : vector<16x1xf32> to vector<16x3xf32>
    %167 = vector.broadcast %165 : vector<1x3xf32> to vector<16x3xf32>
    %168 = arith.mulf %166, %167 : vector<16x3xf32>
    %169 = arith.addf %115, %168 : vector<16x3xf32>
    %c4_i32_48 = arith.constant 4 : i32
    %170 = vector.broadcast %c4_i32_48 : i32 to vector<1x5xi32>
    %171 = arith.cmpi eq, %11, %170 : vector<1x5xi32>
    %172 = vector.shape_cast %171 : vector<1x5xi1> to vector<1x5xi1>
    %173 = vector.broadcast %172 : vector<1x5xi1> to vector<16x5xi1>
    %174 = vector.shape_cast %161 : vector<16x1xf32> to vector<16x1xf32>
    %175 = vector.broadcast %174 : vector<16x1xf32> to vector<16x5xf32>
    %176 = arith.select %173, %175, %126 : vector<16x5xi1>, vector<16x5xf32>
    %c3_i32 = arith.constant 3 : i32
    %c0_49 = arith.constant 0 : index
    %c0_50 = arith.constant 0 : index
    %177 = vector.load %arg4[%c0_49, %c0_50] : memref<16x3xf32, #tpu.memory_space<vmem>>, vector<16x3xf32>
    tpu.vector_store %arg4[%c0_49, %c0_50], %169 {strides = array<i32>} : memref<16x3xf32, #tpu.memory_space<vmem>>, vector<16x3xf32>,
    return
  }
  func.func @transform_0(%arg0: i32) -> (i32, i32) {
    %c0_i32 = arith.constant 0 : i32
    %c0_i32_0 = arith.constant 0 : i32
    %c0_i32_1 = arith.constant 0 : i32
    return %c0_i32, %c0_i32_0 : i32, i32
  }
  func.func @transform_1(%arg0: i32) -> (i32, i32) {
    %c0_i32 = arith.constant 0 : i32
    %c0_i32_0 = arith.constant 0 : i32
    %c0_i32_1 = arith.constant 0 : i32
    return %c0_i32, %c0_i32_0 : i32, i32
  }
  func.func @transform_2(%arg0: i32) -> (i32, i32) {
    %c0_i32 = arith.constant 0 : i32
    %c0_i32_0 = arith.constant 0 : i32
    %c0_i32_1 = arith.constant 0 : i32
    return %c0_i32, %c0_i32_0 : i32, i32
  }
  func.func @transform_3(%arg0: i32) -> (i32, i32) {
    %c0_i32 = arith.constant 0 : i32
    %c0_i32_0 = arith.constant 0 : i32
    %c0_i32_1 = arith.constant 0 : i32
    return %c0_i32, %c0_i32_0 : i32, i32
  }
}

</mosaic_0001>

<llo_original>
// kernel: tpu_custom_call.1
$region0: #{tpu_custom_call.1}
  #allocation0 [shape = 'u32[]', space=smem, size = 0x4, offset = 0x4, fixed_abs, tag = 'smem constant byte address 0x4 - core index']
  #allocation1 [shape = 'u32[72,128]{1,0:T(1,128)}', space=vmem, size = 0x9000, scoped, tag = 'internal scratch']
  %s0 = inlined_call_operand.hbm [shape: f32[16,16], index: 0, kind: input, shape index: {}]
  %s1 = inlined_call_operand.vmem [shape: f32[16,5], index: 1, kind: input, shape index: {}]
  %s2 = inlined_call_operand.vmem [shape: f32[24,119], index: 2, kind: input, shape index: {}]
  %s3 = inlined_call_operand.vmem [shape: f32[16,3], index: 3, kind: output, shape index: {}]
  %s4 = sld [smem:[#allocation0]]
  $region26: #{tpu_custom_call.1} parent=0
    _
  %s6 = ssub.s32 1, %s4
  %s7 = scalar_select 0, %s6, %s4
  $region1: #{tpu_custom_call.1} parent=0
    #allocation2 [shape = 'u8[8192]{0}', space=vmem, size = 0x2000, scoped, tag = 'input window, operand 0, single buffered']
    #allocation3 [shape = 's32[1]{0}', space=sflag, size = 0x4, scoped, tag = 'scoped memory for tpu_custom_call.1']
    %8 = vsyncpa [#allocation3], 0
    // Predicated region
    $region2: #{tpu_custom_call.1} parent=1 // pred_check
      _
    $region3: #{tpu_custom_call.1} parent=1 // pred_check_branch
      %10 = sbr.rel (0) target = $region5
    $region4: #{tpu_custom_call.1} parent=1 // pred_region
      %12 = vsyncadd [#allocation3], 0
      %s13 = sshll.u32 %s0, 4
      %s14 = int_to_ptr.hbm [resolvable:$true] %s13
      %s15 = sshll.u32 [#allocation2], 4
      %s16 = int_to_ptr.vmem [resolvable:$true] %s15
      %21 = dma.hbm_to_vmem [thread:$0]  %s14, 256, %s16, [#allocation3], 128, 128, 8
    $region5: #{tpu_custom_call.1} parent=1 // pred_fallthru
      _
    // Predicated region
    $region6: #{tpu_custom_call.1} parent=1 // pred_check
      _
    $region7: #{tpu_custom_call.1} parent=1 // pred_check_branch
      %23 = sbr.rel (0) target = $region9
    $region8: #{tpu_custom_call.1} parent=1 // pred_region
      _
    $region9: #{tpu_custom_call.1} parent=1 // pred_fallthru
      _
    // Predicated region
    $region10: #{tpu_custom_call.1} parent=1 // pred_check
      _
    $region11: #{tpu_custom_call.1} parent=1 // pred_check_branch
      %25 = sbr.rel (0) target = $region13
    $region12: #{tpu_custom_call.1} parent=1 // pred_region
      _
    $region13: #{tpu_custom_call.1} parent=1 // pred_fallthru
      _
    // Predicated region
    $region14: #{tpu_custom_call.1} parent=1 // pred_check
      _
    $region15: #{tpu_custom_call.1} parent=1 // pred_check_branch
      %27 = sbr.rel (0) target = $region17
    $region16: #{tpu_custom_call.1} parent=1 // pred_region
      %29 = dma.done [#allocation3], 256
    $region17: #{tpu_custom_call.1} parent=1 // pred_fallthru
      _
    %v30 = vld [vmem:[#allocation2] sm:$0xff]
    %v31 = vld [vmem:[#allocation2 + $0x8] sm:$0xff]
    %v32 = vld [vmem:[%s1] sm:$0xff]
    %v33 = vld [vmem:[%s1 + $0x8] sm:$0xff]
    %v34 = vld [vmem:[%s2] sm:$0xff]
    %v35 = vld [vmem:[%s2 + $0x8] sm:$0xff]
    %v36 = vld [vmem:[%s2 + $0x10] sm:$0xff]
    %v37 = vlaneseq
    %v38 = vand.u32 %v37, 127
    %vm39 = vcmask 39936
    %v41 = vsel %vm39, %v32, 0
    %v44 = vsel %vm39, %v33, 0
    %vm46 = vcmask 1044480
    %v48 = vsel %vm46, %v34, 0
    %50 = vmatpush.msra.mxu0 0.0
    %51 = vmatpush.msra.mxu0 0.0
    %52 = vmatpush.msra.mxu0 0.0
    %53 = vmatpush.msra.mxu0 0.0
    %54 = vmatpush.msra.mxu0 0.0
    %55 = vmatpush.msra.mxu0 0.0
    %56 = vmatpush.msra.mxu0 0.0
    %57 = vmatpush.msra.mxu0 0.0
    %58 = vmatpush.msra.mxu0 0.0
    %59 = vmatpush.msra.mxu0 0.0
    %60 = vmatpush.msra.mxu0 0.0
    %61 = vmatpush.msra.mxu0 0.0
    %62 = vmatpush.msra.mxu0 0.0
    %63 = vmatpush.msra.mxu0 0.0
    %64 = vmatpush.msra.mxu0 0.0
    %65 = vmatpush.msra.mxu0 %v48
    %66 = vmatmul.f32.gmra.mxu0 %v41
    %v67 = vpop.f32.mrf.mxu0
    %v68 = vadd.f32 0.0, %v67
    %69 = vmatmul.f32.gmra.mxu0 %v44
    %v70 = vpop.f32.mrf.mxu0
    %v71 = vadd.f32 0.0, %v70
    %72 = vdwg.mxu0
    %v73 = vperm.slane %v34, 0
    %75 = vrot.lane.b32.xlu0 %v73, 46
    %v76 = vpop.permute.xlu0 %75
    %vm78 = vcmask 130048
    %v80 = vsel %vm78, %v30, 0
    %v83 = vsel %vm78, %v31, 0
    %85 = vmatpush.msra.mxu0 0.0
    %86 = vmatpush.msra.mxu0 0.0
    %87 = vmatpush.msra.mxu0 0.0
    %88 = vmatpush.msra.mxu0 0.0
    %89 = vmatpush.msra.mxu0 0.0
    %90 = vmatpush.msra.mxu0 0.0
    %91 = vmatpush.msra.mxu0 0.0
    %92 = vmatpush.msra.mxu0 0.0
    %93 = vmatpush.msra.mxu0 0.0
    %94 = vmatpush.msra.mxu0 0.0
    %95 = vmatpush.msra.mxu0 0.0
    %96 = vmatpush.msra.mxu0 0.0
    %97 = vmatpush.msra.mxu0 0.0
    %98 = vmatpush.msra.mxu0 0.0
    %99 = vmatpush.msra.mxu0 %v71
    %100 = vmatpush.msra.mxu0 %v68
    %101 = vmatmul.f32.gmra.mxu0 %v80
    %v102 = vpop.f32.mrf.mxu0
    %v103 = vadd.f32 %v76, %v102
    %104 = vmatmul.f32.gmra.mxu0 %v83
    %v105 = vpop.f32.mrf.mxu0
    %v106 = vadd.f32 %v76, %v105
    %107 = vdwg.mxu0
    %vm108 = vcmp.gt.f32.partialorder %v103, 0.0
    %vm109 = vcmp.gt.f32.partialorder %v106, 0.0
    %v110 = vmul.f32 %v103, 0.01
    %v111 = vmul.f32 %v106, 0.01
    %v112 = vsel %vm108, %v103, %v110
    %v113 = vsel %vm109, %v106, %v111
    %114 = vrot.lane.b32.xlu0 %v34, 95
    %v115 = vpop.permute.xlu0 %114
    %vm117 = vcmask 64512
    %v119 = vsel %vm117, %v112, 0
    %v122 = vsel %vm117, %v113, 0
    %124 = vmatpush.msra.mxu0 0.0
    %125 = vmatpush.msra.mxu0 0.0
    %126 = vmatpush.msra.mxu0 0.0
    %127 = vmatpush.msra.mxu0 0.0
    %128 = vmatpush.msra.mxu0 0.0
    %129 = vmatpush.msra.mxu0 0.0
    %130 = vmatpush.msra.mxu0 0.0
    %131 = vmatpush.msra.mxu0 0.0
    %132 = vmatpush.msra.mxu0 0.0
    %133 = vmatpush.msra.mxu0 0.0
    %134 = vmatpush.msra.mxu0 0.0
    %135 = vmatpush.msra.mxu0 0.0
    %136 = vmatpush.msra.mxu0 0.0
    %137 = vmatpush.msra.mxu0 0.0
    %138 = vmatpush.msra.mxu0 0.0
    %139 = vmatpush.msra.mxu0 %v115
    %140 = vmatmul.f32.gmra.mxu0 %v119
    %v141 = vpop.f32.mrf.mxu0
    %v142 = vadd.f32 0.0, %v141
    %143 = vmatmul.f32.gmra.mxu0 %v122
    %v144 = vpop.f32.mrf.mxu0
    %v145 = vadd.f32 0.0, %v144
    %146 = vdwg.mxu0
    %v147 = vadd.f32 %v68, %v142
    %v148 = vadd.f32 %v71, %v145
    %149 = vrot.lane.b32.xlu0 %v73, 38
    %v150 = vpop.permute.xlu0 %149
    %152 = vmatpush.msra.mxu0 0.0
    %153 = vmatpush.msra.mxu0 0.0
    %154 = vmatpush.msra.mxu0 0.0
    %155 = vmatpush.msra.mxu0 0.0
    %156 = vmatpush.msra.mxu0 0.0
    %157 = vmatpush.msra.mxu0 0.0
    %158 = vmatpush.msra.mxu0 0.0
    %159 = vmatpush.msra.mxu0 0.0
    %160 = vmatpush.msra.mxu0 0.0
    %161 = vmatpush.msra.mxu0 0.0
    %162 = vmatpush.msra.mxu0 0.0
    %163 = vmatpush.msra.mxu0 0.0
    %164 = vmatpush.msra.mxu0 0.0
    %165 = vmatpush.msra.mxu0 0.0
    %166 = vmatpush.msra.mxu0 %v145
    %167 = vmatpush.msra.mxu0 %v142
    %168 = vmatmul.f32.gmra.mxu0 %v80
    %v169 = vpop.f32.mrf.mxu0
    %v170 = vadd.f32 %v150, %v169
    %171 = vmatmul.f32.gmra.mxu0 %v83
    %v172 = vpop.f32.mrf.mxu0
    %v173 = vadd.f32 %v150, %v172
    %174 = vdwg.mxu0
    %vm175 = vcmp.gt.f32.partialorder %v170, 0.0
    %vm176 = vcmp.gt.f32.partialorder %v173, 0.0
    %v177 = vmul.f32 %v170, 0.01
    %v178 = vmul.f32 %v173, 0.01
    %v179 = vsel %vm175, %v170, %v177
    %v180 = vsel %vm176, %v173, %v178
    %181 = vrot.lane.b32.xlu0 %v34, 67
    %v182 = vpop.permute.xlu0 %181
    %v185 = vsel %vm117, %v179, 0
    %v188 = vsel %vm117, %v180, 0
    %190 = vmatpush.msra.mxu0 0.0
    %191 = vmatpush.msra.mxu0 0.0
    %192 = vmatpush.msra.mxu0 0.0
    %193 = vmatpush.msra.mxu0 0.0
    %194 = vmatpush.msra.mxu0 0.0
    %195 = vmatpush.msra.mxu0 0.0
    %196 = vmatpush.msra.mxu0 0.0
    %197 = vmatpush.msra.mxu0 0.0
    %198 = vmatpush.msra.mxu0 0.0
    %199 = vmatpush.msra.mxu0 0.0
    %200 = vmatpush.msra.mxu0 0.0
    %201 = vmatpush.msra.mxu0 0.0
    %202 = vmatpush.msra.mxu0 0.0
    %203 = vmatpush.msra.mxu0 0.0
    %204 = vmatpush.msra.mxu0 0.0
    %205 = vmatpush.msra.mxu0 %v182
    %206 = vmatmul.f32.gmra.mxu0 %v185
    %v207 = vpop.f32.mrf.mxu0
    %v208 = vadd.f32 0.0, %v207
    %209 = vmatmul.f32.gmra.mxu0 %v188
    %v210 = vpop.f32.mrf.mxu0
    %v211 = vadd.f32 0.0, %v210
    %212 = vdwg.mxu0
    %215 = vrot.lane.b32.xlu0 %v208, 8
    %v216 = vpop.permute.xlu0 %215
    %217 = vrot.lane.b32.xlu0 %v211, 8
    %v218 = vpop.permute.xlu0 %217
    %v221 = vadd.f32 %v147, %v216
    %v222 = vadd.f32 %v148, %v218
    %225 = vrot.lane.b32.xlu0 %v221, 120
    %v226 = vpop.permute.xlu0 %225
    %227 = vrot.lane.b32.xlu0 %v222, 120
    %v228 = vpop.permute.xlu0 %227
    %231 = vrot.lane.b32.xlu0 %v73, 30
    %v232 = vpop.permute.xlu0 %231
    %234 = vmatpush.msra.mxu0 0.0
    %235 = vmatpush.msra.mxu0 0.0
    %236 = vmatpush.msra.mxu0 0.0
    %237 = vmatpush.msra.mxu0 0.0
    %238 = vmatpush.msra.mxu0 0.0
    %239 = vmatpush.msra.mxu0 0.0
    %240 = vmatpush.msra.mxu0 0.0
    %241 = vmatpush.msra.mxu0 0.0
    %242 = vmatpush.msra.mxu0 0.0
    %243 = vmatpush.msra.mxu0 0.0
    %244 = vmatpush.msra.mxu0 0.0
    %245 = vmatpush.msra.mxu0 0.0
    %246 = vmatpush.msra.mxu0 0.0
    %247 = vmatpush.msra.mxu0 0.0
    %248 = vmatpush.msra.mxu0 %v228
    %249 = vmatpush.msra.mxu0 %v226
    %250 = vmatmul.f32.gmra.mxu0 %v80
    %v251 = vpop.f32.mrf.mxu0
    %v252 = vadd.f32 %v232, %v251
    %253 = vmatmul.f32.gmra.mxu0 %v83
    %v254 = vpop.f32.mrf.mxu0
    %v255 = vadd.f32 %v232, %v254
    %256 = vdwg.mxu0
    %vm257 = vcmp.gt.f32.partialorder %v252, 0.0
    %vm258 = vcmp.gt.f32.partialorder %v255, 0.0
    %v259 = vmul.f32 %v252, 0.01
    %v260 = vmul.f32 %v255, 0.01
    %v261 = vsel %vm257, %v252, %v259
    %v262 = vsel %vm258, %v255, %v260
    %265 = vrot.lane.b32.xlu0 %v34, 47
    %v266 = vpop.permute.xlu0 %265
    %267 = vrot.lane.b32.xlu0 %v35, 47
    %v268 = vpop.permute.xlu0 %267
    %269 = vrot.lane.b32.xlu0 %v36, 47
    %v270 = vpop.permute.xlu0 %269
    %vm273 = vcmask 162816
    %v275 = vsel %vm273, %v261, 0
    %v278 = vsel %vm273, %v262, 0
    %vm280 = vcmask 1043456
    %v281 = vsel %vm280, %v270, 0
    %283 = vmatpush.msra.mxu0 0.0
    %284 = vmatpush.msra.mxu0 0.0
    %285 = vmatpush.msra.mxu0 0.0
    %286 = vmatpush.msra.mxu0 0.0
    %287 = vmatpush.msra.mxu0 0.0
    %288 = vmatpush.msra.mxu0 0.0
    %289 = vmatpush.msra.mxu0 0.0
    %290 = vmatpush.msra.mxu0 0.0
    %291 = vmatpush.msra.mxu0 0.0
    %292 = vmatpush.msra.mxu0 0.0
    %293 = vmatpush.msra.mxu0 0.0
    %294 = vmatpush.msra.mxu0 0.0
    %295 = vmatpush.msra.mxu0 0.0
    %296 = vmatpush.msra.mxu0 %v281
    %297 = vmatpush.msra.mxu0 %v268
    %298 = vmatpush.msra.mxu0 %v266
    %299 = vmatmul.f32.gmra.mxu0 %v275
    %v300 = vpop.f32.mrf.mxu0
    %v301 = vadd.f32 0.0, %v300
    %302 = vmatmul.f32.gmra.mxu0 %v278
    %v303 = vpop.f32.mrf.mxu0
    %v304 = vadd.f32 0.0, %v303
    %305 = vdwg.mxu0
    %306 = vrot.lane.b32.xlu0 %v73, 10
    %v307 = vpop.permute.xlu0 %306
    %309 = vmatpush.msra.mxu0 0.0
    %310 = vmatpush.msra.mxu0 0.0
    %311 = vmatpush.msra.mxu0 0.0
    %312 = vmatpush.msra.mxu0 0.0
    %313 = vmatpush.msra.mxu0 0.0
    %314 = vmatpush.msra.mxu0 0.0
    %315 = vmatpush.msra.mxu0 0.0
    %316 = vmatpush.msra.mxu0 0.0
    %317 = vmatpush.msra.mxu0 0.0
    %318 = vmatpush.msra.mxu0 0.0
    %319 = vmatpush.msra.mxu0 0.0
    %320 = vmatpush.msra.mxu0 0.0
    %321 = vmatpush.msra.mxu0 0.0
    %322 = vmatpush.msra.mxu0 0.0
    %323 = vmatpush.msra.mxu0 %v304
    %324 = vmatpush.msra.mxu0 %v301
    %325 = vmatmul.f32.gmra.mxu0 %v80
    %v326 = vpop.f32.mrf.mxu0
    %v327 = vadd.f32 %v307, %v326
    %328 = vmatmul.f32.gmra.mxu0 %v83
    %v329 = vpop.f32.mrf.mxu0
    %v330 = vadd.f32 %v307, %v329
    %331 = vdwg.mxu0
    %334 = vrot.lane.b32.xlu0 %v327, 4
    %v335 = vpop.permute.xlu0 %334
    %336 = vrot.lane.b32.xlu0 %v330, 4
    %v337 = vpop.permute.xlu0 %336
    %v340 = vadd.f32 %v32, %v335
    %v341 = vadd.f32 %v33, %v337
    %vm342 = vcmp.eq.s32.totalorder %v38, 0
    %v343 = vsel %vm342, 1, 0
    %v344 = vcvt.s32.f32 %v343
    %346 = vset.pattern.permute.xlu0 4
    %347 = vperm.xlu0 %346, %v340
    %v348 = vpop.permute.xlu0 %347
    %351 = vset.pattern.permute.xlu0 4
    %352 = vperm.xlu0 %351, %v341
    %v353 = vpop.permute.xlu0 %352
    %v355 = vmul.f32 %v348, %v344
    %v356 = vmul.f32 %v353, %v344
    %v357 = vadd.f32 %v355, 0.0
    %v358 = vadd.f32 %v356, 0.0
    %vm359 = vcmp.eq.s32.totalorder %v38, 4
    %v360 = vsel %vm359, 1, 0
    %vm361 = vcmp.eq.s32.totalorder %v360, 1
    %364 = vrot.lane.b32.xlu0 %v68, 100
    %v365 = vpop.permute.xlu0 %364
    %366 = vrot.lane.b32.xlu0 %v71, 100
    %v367 = vpop.permute.xlu0 %366
    %v370 = vsel %vm361, %v348, %v365
    %v371 = vsel %vm361, %v353, %v367
    %v373 = vsel %vm39, %v370, 0
    %v376 = vsel %vm39, %v371, 0
    %378 = vmatpush.msra.mxu0 0.0
    %379 = vmatpush.msra.mxu0 0.0
    %380 = vmatpush.msra.mxu0 0.0
    %381 = vmatpush.msra.mxu0 0.0
    %382 = vmatpush.msra.mxu0 0.0
    %383 = vmatpush.msra.mxu0 0.0
    %384 = vmatpush.msra.mxu0 0.0
    %385 = vmatpush.msra.mxu0 0.0
    %386 = vmatpush.msra.mxu0 0.0
    %387 = vmatpush.msra.mxu0 0.0
    %388 = vmatpush.msra.mxu0 0.0
    %389 = vmatpush.msra.mxu0 0.0
    %390 = vmatpush.msra.mxu0 0.0
    %391 = vmatpush.msra.mxu0 0.0
    %392 = vmatpush.msra.mxu0 0.0
    %393 = vmatpush.msra.mxu0 %v48
    %394 = vmatmul.f32.gmra.mxu0 %v373
    %v395 = vpop.f32.mrf.mxu0
    %v396 = vadd.f32 0.0, %v395
    %397 = vmatmul.f32.gmra.mxu0 %v376
    %v398 = vpop.f32.mrf.mxu0
    %v399 = vadd.f32 0.0, %v398
    %400 = vdwg.mxu0
    %401 = vmatpush.msra.mxu0 0.0
    %402 = vmatpush.msra.mxu0 0.0
    %403 = vmatpush.msra.mxu0 0.0
    %404 = vmatpush.msra.mxu0 0.0
    %405 = vmatpush.msra.mxu0 0.0
    %406 = vmatpush.msra.mxu0 0.0
    %407 = vmatpush.msra.mxu0 0.0
    %408 = vmatpush.msra.mxu0 0.0
    %409 = vmatpush.msra.mxu0 0.0
    %410 = vmatpush.msra.mxu0 0.0
    %411 = vmatpush.msra.mxu0 0.0
    %412 = vmatpush.msra.mxu0 0.0
    %413 = vmatpush.msra.mxu0 0.0
    %414 = vmatpush.msra.mxu0 0.0
    %415 = vmatpush.msra.mxu0 %v399
    %416 = vmatpush.msra.mxu0 %v396
    %417 = vmatmul.f32.gmra.mxu0 %v80
    %v418 = vpop.f32.mrf.mxu0
    %v419 = vadd.f32 %v76, %v418
    %420 = vmatmul.f32.gmra.mxu0 %v83
    %v421 = vpop.f32.mrf.mxu0
    %v422 = vadd.f32 %v76, %v421
    %423 = vdwg.mxu0
    %vm424 = vcmp.gt.f32.partialorder %v419, 0.0
    %vm425 = vcmp.gt.f32.partialorder %v422, 0.0
    %v426 = vmul.f32 %v419, 0.01
    %v427 = vmul.f32 %v422, 0.01
    %v428 = vsel %vm424, %v419, %v426
    %v429 = vsel %vm425, %v422, %v427
    %v431 = vsel %vm117, %v428, 0
    %v434 = vsel %vm117, %v429, 0
    %436 = vmatpush.msra.mxu0 0.0
    %437 = vmatpush.msra.mxu0 0.0
    %438 = vmatpush.msra.mxu0 0.0
    %439 = vmatpush.msra.mxu0 0.0
    %440 = vmatpush.msra.mxu0 0.0
    %441 = vmatpush.msra.mxu0 0.0
    %442 = vmatpush.msra.mxu0 0.0
    %443 = vmatpush.msra.mxu0 0.0
    %444 = vmatpush.msra.mxu0 0.0
    %445 = vmatpush.msra.mxu0 0.0
    %446 = vmatpush.msra.mxu0 0.0
    %447 = vmatpush.msra.mxu0 0.0
    %448 = vmatpush.msra.mxu0 0.0
    %449 = vmatpush.msra.mxu0 0.0
    %450 = vmatpush.msra.mxu0 0.0
    %451 = vmatpush.msra.mxu0 %v115
    %452 = vmatmul.f32.gmra.mxu0 %v431
    %v453 = vpop.f32.mrf.mxu0
    %v454 = vadd.f32 0.0, %v453
    %455 = vmatmul.f32.gmra.mxu0 %v434
    %v456 = vpop.f32.mrf.mxu0
    %v457 = vadd.f32 0.0, %v456
    %458 = vdwg.mxu0
    %v459 = vadd.f32 %v396, %v454
    %v460 = vadd.f32 %v399, %v457
    %461 = vmatpush.msra.mxu0 0.0
    %462 = vmatpush.msra.mxu0 0.0
    %463 = vmatpush.msra.mxu0 0.0
    %464 = vmatpush.msra.mxu0 0.0
    %465 = vmatpush.msra.mxu0 0.0
    %466 = vmatpush.msra.mxu0 0.0
    %467 = vmatpush.msra.mxu0 0.0
    %468 = vmatpush.msra.mxu0 0.0
    %469 = vmatpush.msra.mxu0 0.0
    %470 = vmatpush.msra.mxu0 0.0
    %471 = vmatpush.msra.mxu0 0.0
    %472 = vmatpush.msra.mxu0 0.0
    %473 = vmatpush.msra.mxu0 0.0
    %474 = vmatpush.msra.mxu0 0.0
    %475 = vmatpush.msra.mxu0 %v457
    %476 = vmatpush.msra.mxu0 %v454
    %477 = vmatmul.f32.gmra.mxu0 %v80
    %v478 = vpop.f32.mrf.mxu0
    %v479 = vadd.f32 %v150, %v478
    %480 = vmatmul.f32.gmra.mxu0 %v83
    %v481 = vpop.f32.mrf.mxu0
    %v482 = vadd.f32 %v150, %v481
    %483 = vdwg.mxu0
    %vm484 = vcmp.gt.f32.partialorder %v479, 0.0
    %vm485 = vcmp.gt.f32.partialorder %v482, 0.0
    %v486 = vmul.f32 %v479, 0.01
    %v487 = vmul.f32 %v482, 0.01
    %v488 = vsel %vm484, %v479, %v486
    %v489 = vsel %vm485, %v482, %v487
    %v491 = vsel %vm117, %v488, 0
    %v494 = vsel %vm117, %v489, 0
    %496 = vmatpush.msra.mxu0 0.0
    %497 = vmatpush.msra.mxu0 0.0
    %498 = vmatpush.msra.mxu0 0.0
    %499 = vmatpush.msra.mxu0 0.0
    %500 = vmatpush.msra.mxu0 0.0
    %501 = vmatpush.msra.mxu0 0.0
    %502 = vmatpush.msra.mxu0 0.0
    %503 = vmatpush.msra.mxu0 0.0
    %504 = vmatpush.msra.mxu0 0.0
    %505 = vmatpush.msra.mxu0 0.0
    %506 = vmatpush.msra.mxu0 0.0
    %507 = vmatpush.msra.mxu0 0.0
    %508 = vmatpush.msra.mxu0 0.0
    %509 = vmatpush.msra.mxu0 0.0
    %510 = vmatpush.msra.mxu0 0.0
    %511 = vmatpush.msra.mxu0 %v182
    %512 = vmatmul.f32.gmra.mxu0 %v491
    %v513 = vpop.f32.mrf.mxu0
    %v514 = vadd.f32 0.0, %v513
    %515 = vmatmul.f32.gmra.mxu0 %v494
    %v516 = vpop.f32.mrf.mxu0
    %v517 = vadd.f32 0.0, %v516
    %518 = vdwg.mxu0
    %521 = vrot.lane.b32.xlu0 %v514, 8
    %v522 = vpop.permute.xlu0 %521
    %523 = vrot.lane.b32.xlu0 %v517, 8
    %v524 = vpop.permute.xlu0 %523
    %v527 = vadd.f32 %v459, %v522
    %v528 = vadd.f32 %v460, %v524
    %531 = vrot.lane.b32.xlu0 %v527, 120
    %v532 = vpop.permute.xlu0 %531
    %533 = vrot.lane.b32.xlu0 %v528, 120
    %v534 = vpop.permute.xlu0 %533
    %537 = vmatpush.msra.mxu0 0.0
    %538 = vmatpush.msra.mxu0 0.0
    %539 = vmatpush.msra.mxu0 0.0
    %540 = vmatpush.msra.mxu0 0.0
    %541 = vmatpush.msra.mxu0 0.0
    %542 = vmatpush.msra.mxu0 0.0
    %543 = vmatpush.msra.mxu0 0.0
    %544 = vmatpush.msra.mxu0 0.0
    %545 = vmatpush.msra.mxu0 0.0
    %546 = vmatpush.msra.mxu0 0.0
    %547 = vmatpush.msra.mxu0 0.0
    %548 = vmatpush.msra.mxu0 0.0
    %549 = vmatpush.msra.mxu0 0.0
    %550 = vmatpush.msra.mxu0 0.0
    %551 = vmatpush.msra.mxu0 %v534
    %552 = vmatpush.msra.mxu0 %v532
    %553 = vmatmul.f32.gmra.mxu0 %v80
    %v554 = vpop.f32.mrf.mxu0
    %v555 = vadd.f32 %v232, %v554
    %556 = vmatmul.f32.gmra.mxu0 %v83
    %v557 = vpop.f32.mrf.mxu0
    %v558 = vadd.f32 %v232, %v557
    %559 = vdwg.mxu0
    %vm560 = vcmp.gt.f32.partialorder %v555, 0.0
    %vm561 = vcmp.gt.f32.partialorder %v558, 0.0
    %v562 = vmul.f32 %v555, 0.01
    %v563 = vmul.f32 %v558, 0.01
    %v564 = vsel %vm560, %v555, %v562
    %v565 = vsel %vm561, %v558, %v563
    %v567 = vsel %vm273, %v564, 0
    %v570 = vsel %vm273, %v565, 0
    %572 = vmatpush.msra.mxu0 0.0
    %573 = vmatpush.msra.mxu0 0.0
    %574 = vmatpush.msra.mxu0 0.0
    %575 = vmatpush.msra.mxu0 0.0
    %576 = vmatpush.msra.mxu0 0.0
    %577 = vmatpush.msra.mxu0 0.0
    %578 = vmatpush.msra.mxu0 0.0
    %579 = vmatpush.msra.mxu0 0.0
    %580 = vmatpush.msra.mxu0 0.0
    %581 = vmatpush.msra.mxu0 0.0
    %582 = vmatpush.msra.mxu0 0.0
    %583 = vmatpush.msra.mxu0 0.0
    %584 = vmatpush.msra.mxu0 0.0
    %585 = vmatpush.msra.mxu0 %v281
    %586 = vmatpush.msra.mxu0 %v268
    %587 = vmatpush.msra.mxu0 %v266
    %588 = vmatmul.f32.gmra.mxu0 %v567
    %v589 = vpop.f32.mrf.mxu0
    %v590 = vadd.f32 0.0, %v589
    %591 = vmatmul.f32.gmra.mxu0 %v570
    %v592 = vpop.f32.mrf.mxu0
    %v593 = vadd.f32 0.0, %v592
    %594 = vdwg.mxu0
    %595 = vmatpush.msra.mxu0 0.0
    %596 = vmatpush.msra.mxu0 0.0
    %597 = vmatpush.msra.mxu0 0.0
    %598 = vmatpush.msra.mxu0 0.0
    %599 = vmatpush.msra.mxu0 0.0
    %600 = vmatpush.msra.mxu0 0.0
    %601 = vmatpush.msra.mxu0 0.0
    %602 = vmatpush.msra.mxu0 0.0
    %603 = vmatpush.msra.mxu0 0.0
    %604 = vmatpush.msra.mxu0 0.0
    %605 = vmatpush.msra.mxu0 0.0
    %606 = vmatpush.msra.mxu0 0.0
    %607 = vmatpush.msra.mxu0 0.0
    %608 = vmatpush.msra.mxu0 0.0
    %609 = vmatpush.msra.mxu0 %v593
    %610 = vmatpush.msra.mxu0 %v590
    %611 = vmatmul.f32.gmra.mxu0 %v80
    %v612 = vpop.f32.mrf.mxu0
    %v613 = vadd.f32 %v307, %v612
    %614 = vmatmul.f32.gmra.mxu0 %v83
    %v615 = vpop.f32.mrf.mxu0
    %v616 = vadd.f32 %v307, %v615
    %617 = vdwg.mxu0
    %620 = vrot.lane.b32.xlu0 %v613, 4
    %v621 = vpop.permute.xlu0 %620
    %622 = vrot.lane.b32.xlu0 %v616, 4
    %v623 = vpop.permute.xlu0 %622
    %v626 = vadd.f32 %v340, %v621
    %v627 = vadd.f32 %v341, %v623
    %vm628 = vcmp.eq.s32.totalorder %v38, 1
    %v629 = vsel %vm628, 1, 0
    %v630 = vcvt.s32.f32 %v629
    %632 = vset.pattern.permute.xlu0 4
    %633 = vperm.xlu0 %632, %v626
    %v634 = vpop.permute.xlu0 %633
    %637 = vset.pattern.permute.xlu0 4
    %638 = vperm.xlu0 %637, %v627
    %v639 = vpop.permute.xlu0 %638
    %v641 = vmul.f32 %v634, %v630
    %v642 = vmul.f32 %v639, %v630
    %v643 = vadd.f32 %v357, %v641
    %v644 = vadd.f32 %v358, %v642
    %647 = vrot.lane.b32.xlu0 %v396, 100
    %v648 = vpop.permute.xlu0 %647
    %649 = vrot.lane.b32.xlu0 %v399, 100
    %v650 = vpop.permute.xlu0 %649
    %v653 = vsel %vm361, %v634, %v648
    %v654 = vsel %vm361, %v639, %v650
    %v656 = vsel %vm39, %v653, 0
    %v659 = vsel %vm39, %v654, 0
    %661 = vmatpush.msra.mxu0 0.0
    %662 = vmatpush.msra.mxu0 0.0
    %663 = vmatpush.msra.mxu0 0.0
    %664 = vmatpush.msra.mxu0 0.0
    %665 = vmatpush.msra.mxu0 0.0
    %666 = vmatpush.msra.mxu0 0.0
    %667 = vmatpush.msra.mxu0 0.0
    %668 = vmatpush.msra.mxu0 0.0
    %669 = vmatpush.msra.mxu0 0.0
    %670 = vmatpush.msra.mxu0 0.0
    %671 = vmatpush.msra.mxu0 0.0
    %672 = vmatpush.msra.mxu0 0.0
    %673 = vmatpush.msra.mxu0 0.0
    %674 = vmatpush.msra.mxu0 0.0
    %675 = vmatpush.msra.mxu0 0.0
    %676 = vmatpush.msra.mxu0 %v48
    %677 = vmatmul.f32.gmra.mxu0 %v656
    %v678 = vpop.f32.mrf.mxu0
    %v679 = vadd.f32 0.0, %v678
    %680 = vmatmul.f32.gmra.mxu0 %v659
    %v681 = vpop.f32.mrf.mxu0
    %v682 = vadd.f32 0.0, %v681
    %683 = vdwg.mxu0
    %684 = vmatpush.msra.mxu0 0.0
    %685 = vmatpush.msra.mxu0 0.0
    %686 = vmatpush.msra.mxu0 0.0
    %687 = vmatpush.msra.mxu0 0.0
    %688 = vmatpush.msra.mxu0 0.0
    %689 = vmatpush.msra.mxu0 0.0
    %690 = vmatpush.msra.mxu0 0.0
    %691 = vmatpush.msra.mxu0 0.0
    %692 = vmatpush.msra.mxu0 0.0
    %693 = vmatpush.msra.mxu0 0.0
    %694 = vmatpush.msra.mxu0 0.0
    %695 = vmatpush.msra.mxu0 0.0
    %696 = vmatpush.msra.mxu0 0.0
    %697 = vmatpush.msra.mxu0 0.0
    %698 = vmatpush.msra.mxu0 %v682
    %699 = vmatpush.msra.mxu0 %v679
    %700 = vmatmul.f32.gmra.mxu0 %v80
    %v701 = vpop.f32.mrf.mxu0
    %v702 = vadd.f32 %v76, %v701
    %703 = vmatmul.f32.gmra.mxu0 %v83
    %v704 = vpop.f32.mrf.mxu0
    %v705 = vadd.f32 %v76, %v704
    %706 = vdwg.mxu0
    %vm707 = vcmp.gt.f32.partialorder %v702, 0.0
    %vm708 = vcmp.gt.f32.partialorder %v705, 0.0
    %v709 = vmul.f32 %v702, 0.01
    %v710 = vmul.f32 %v705, 0.01
    %v711 = vsel %vm707, %v702, %v709
    %v712 = vsel %vm708, %v705, %v710
    %v714 = vsel %vm117, %v711, 0
    %v717 = vsel %vm117, %v712, 0
    %719 = vmatpush.msra.mxu0 0.0
    %720 = vmatpush.msra.mxu0 0.0
    %721 = vmatpush.msra.mxu0 0.0
    %722 = vmatpush.msra.mxu0 0.0
    %723 = vmatpush.msra.mxu0 0.0
    %724 = vmatpush.msra.mxu0 0.0
    %725 = vmatpush.msra.mxu0 0.0
    %726 = vmatpush.msra.mxu0 0.0
    %727 = vmatpush.msra.mxu0 0.0
    %728 = vmatpush.msra.mxu0 0.0
    %729 = vmatpush.msra.mxu0 0.0
    %730 = vmatpush.msra.mxu0 0.0
    %731 = vmatpush.msra.mxu0 0.0
    %732 = vmatpush.msra.mxu0 0.0
    %733 = vmatpush.msra.mxu0 0.0
    %734 = vmatpush.msra.mxu0 %v115
    %735 = vmatmul.f32.gmra.mxu0 %v714
    %v736 = vpop.f32.mrf.mxu0
    %v737 = vadd.f32 0.0, %v736
    %738 = vmatmul.f32.gmra.mxu0 %v717
    %v739 = vpop.f32.mrf.mxu0
    %v740 = vadd.f32 0.0, %v739
    %741 = vdwg.mxu0
    %v742 = vadd.f32 %v679, %v737
    %v743 = vadd.f32 %v682, %v740
    %744 = vmatpush.msra.mxu0 0.0
    %745 = vmatpush.msra.mxu0 0.0
    %746 = vmatpush.msra.mxu0 0.0
    %747 = vmatpush.msra.mxu0 0.0
    %748 = vmatpush.msra.mxu0 0.0
    %749 = vmatpush.msra.mxu0 0.0
    %750 = vmatpush.msra.mxu0 0.0
    %751 = vmatpush.msra.mxu0 0.0
    %752 = vmatpush.msra.mxu0 0.0
    %753 = vmatpush.msra.mxu0 0.0
    %754 = vmatpush.msra.mxu0 0.0
    %755 = vmatpush.msra.mxu0 0.0
    %756 = vmatpush.msra.mxu0 0.0
    %757 = vmatpush.msra.mxu0 0.0
    %758 = vmatpush.msra.mxu0 %v740
    %759 = vmatpush.msra.mxu0 %v737
    %760 = vmatmul.f32.gmra.mxu0 %v80
    %v761 = vpop.f32.mrf.mxu0
    %v762 = vadd.f32 %v150, %v761
    %763 = vmatmul.f32.gmra.mxu0 %v83
    %v764 = vpop.f32.mrf.mxu0
    %v765 = vadd.f32 %v150, %v764
    %766 = vdwg.mxu0
    %vm767 = vcmp.gt.f32.partialorder %v762, 0.0
    %vm768 = vcmp.gt.f32.partialorder %v765, 0.0
    %v769 = vmul.f32 %v762, 0.01
    %v770 = vmul.f32 %v765, 0.01
    %v771 = vsel %vm767, %v762, %v769
    %v772 = vsel %vm768, %v765, %v770
    %v774 = vsel %vm117, %v771, 0
    %v777 = vsel %vm117, %v772, 0
    %779 = vmatpush.msra.mxu0 0.0
    %780 = vmatpush.msra.mxu0 0.0
    %781 = vmatpush.msra.mxu0 0.0
    %782 = vmatpush.msra.mxu0 0.0
    %783 = vmatpush.msra.mxu0 0.0
    %784 = vmatpush.msra.mxu0 0.0
    %785 = vmatpush.msra.mxu0 0.0
    %786 = vmatpush.msra.mxu0 0.0
    %787 = vmatpush.msra.mxu0 0.0
    %788 = vmatpush.msra.mxu0 0.0
    %789 = vmatpush.msra.mxu0 0.0
    %790 = vmatpush.msra.mxu0 0.0
    %791 = vmatpush.msra.mxu0 0.0
    %792 = vmatpush.msra.mxu0 0.0
    %793 = vmatpush.msra.mxu0 0.0
    %794 = vmatpush.msra.mxu0 %v182
    %795 = vmatmul.f32.gmra.mxu0 %v774
    %v796 = vpop.f32.mrf.mxu0
    %v797 = vadd.f32 0.0, %v796
    %798 = vmatmul.f32.gmra.mxu0 %v777
    %v799 = vpop.f32.mrf.mxu0
    %v800 = vadd.f32 0.0, %v799
    %801 = vdwg.mxu0
    %804 = vrot.lane.b32.xlu0 %v797, 8
    %v805 = vpop.permute.xlu0 %804
    %806 = vrot.lane.b32.xlu0 %v800, 8
    %v807 = vpop.permute.xlu0 %806
    %v810 = vadd.f32 %v742, %v805
    %v811 = vadd.f32 %v743, %v807
    %814 = vrot.lane.b32.xlu0 %v810, 120
    %v815 = vpop.permute.xlu0 %814
    %816 = vrot.lane.b32.xlu0 %v811, 120
    %v817 = vpop.permute.xlu0 %816
    %820 = vmatpush.msra.mxu0 0.0
    %821 = vmatpush.msra.mxu0 0.0
    %822 = vmatpush.msra.mxu0 0.0
    %823 = vmatpush.msra.mxu0 0.0
    %824 = vmatpush.msra.mxu0 0.0
    %825 = vmatpush.msra.mxu0 0.0
    %826 = vmatpush.msra.mxu0 0.0
    %827 = vmatpush.msra.mxu0 0.0
    %828 = vmatpush.msra.mxu0 0.0
    %829 = vmatpush.msra.mxu0 0.0
    %830 = vmatpush.msra.mxu0 0.0
    %831 = vmatpush.msra.mxu0 0.0
    %832 = vmatpush.msra.mxu0 0.0
    %833 = vmatpush.msra.mxu0 0.0
    %834 = vmatpush.msra.mxu0 %v817
    %835 = vmatpush.msra.mxu0 %v815
    %836 = vmatmul.f32.gmra.mxu0 %v80
    %v837 = vpop.f32.mrf.mxu0
    %v838 = vadd.f32 %v232, %v837
    %839 = vmatmul.f32.gmra.mxu0 %v83
    %v840 = vpop.f32.mrf.mxu0
    %v841 = vadd.f32 %v232, %v840
    %842 = vdwg.mxu0
    %vm843 = vcmp.gt.f32.partialorder %v838, 0.0
    %vm844 = vcmp.gt.f32.partialorder %v841, 0.0
    %v845 = vmul.f32 %v838, 0.01
    %v846 = vmul.f32 %v841, 0.01
    %v847 = vsel %vm843, %v838, %v845
    %v848 = vsel %vm844, %v841, %v846
    %v850 = vsel %vm273, %v847, 0
    %v853 = vsel %vm273, %v848, 0
    %855 = vmatpush.msra.mxu0 0.0
    %856 = vmatpush.msra.mxu0 0.0
    %857 = vmatpush.msra.mxu0 0.0
    %858 = vmatpush.msra.mxu0 0.0
    %859 = vmatpush.msra.mxu0 0.0
    %860 = vmatpush.msra.mxu0 0.0
    %861 = vmatpush.msra.mxu0 0.0
    %862 = vmatpush.msra.mxu0 0.0
    %863 = vmatpush.msra.mxu0 0.0
    %864 = vmatpush.msra.mxu0 0.0
    %865 = vmatpush.msra.mxu0 0.0
    %866 = vmatpush.msra.mxu0 0.0
    %867 = vmatpush.msra.mxu0 0.0
    %868 = vmatpush.msra.mxu0 %v281
    %869 = vmatpush.msra.mxu0 %v268
    %870 = vmatpush.msra.mxu0 %v266
    %871 = vmatmul.f32.gmra.mxu0 %v850
    %v872 = vpop.f32.mrf.mxu0
    %v873 = vadd.f32 0.0, %v872
    %874 = vmatmul.f32.gmra.mxu0 %v853
    %v875 = vpop.f32.mrf.mxu0
    %v876 = vadd.f32 0.0, %v875
    %877 = vdwg.mxu0
    %878 = vmatpush.msra.mxu0 0.0
    %879 = vmatpush.msra.mxu0 0.0
    %880 = vmatpush.msra.mxu0 0.0
    %881 = vmatpush.msra.mxu0 0.0
    %882 = vmatpush.msra.mxu0 0.0
    %883 = vmatpush.msra.mxu0 0.0
    %884 = vmatpush.msra.mxu0 0.0
    %885 = vmatpush.msra.mxu0 0.0
    %886 = vmatpush.msra.mxu0 0.0
    %887 = vmatpush.msra.mxu0 0.0
    %888 = vmatpush.msra.mxu0 0.0
    %889 = vmatpush.msra.mxu0 0.0
    %890 = vmatpush.msra.mxu0 0.0
    %891 = vmatpush.msra.mxu0 0.0
    %892 = vmatpush.msra.mxu0 %v876
    %893 = vmatpush.msra.mxu0 %v873
    %894 = vmatmul.f32.gmra.mxu0 %v80
    %v895 = vpop.f32.mrf.mxu0
    %v896 = vadd.f32 %v307, %v895
    %897 = vmatmul.f32.gmra.mxu0 %v83
    %v898 = vpop.f32.mrf.mxu0
    %v899 = vadd.f32 %v307, %v898
    %900 = vdwg.mxu0
    %903 = vrot.lane.b32.xlu0 %v896, 4
    %v904 = vpop.permute.xlu0 %903
    %905 = vrot.lane.b32.xlu0 %v899, 4
    %v906 = vpop.permute.xlu0 %905
    %v909 = vadd.f32 %v626, %v904
    %v910 = vadd.f32 %v627, %v906
    %vm911 = vcmp.eq.s32.totalorder %v38, 2
    %v912 = vsel %vm911, 1, 0
    %v913 = vcvt.s32.f32 %v912
    %915 = vset.pattern.permute.xlu0 4
    %916 = vperm.xlu0 %915, %v909
    %v917 = vpop.permute.xlu0 %916
    %920 = vset.pattern.permute.xlu0 4
    %921 = vperm.xlu0 %920, %v910
    %v922 = vpop.permute.xlu0 %921
    %v924 = vmul.f32 %v917, %v913
    %v925 = vmul.f32 %v922, %v913
    %v926 = vadd.f32 %v643, %v924
    %v927 = vadd.f32 %v644, %v925
    %vm928 = vcmask 23552
    %929 = vst.msk [vmem:[%s3] sm:$0xff] %vm928, %v926
    %930 = vst.msk [vmem:[%s3 + $0x8] sm:$0xff] %vm928, %v927
    // Predicated region
    $region18: #{tpu_custom_call.1} parent=1 // pred_check
      _
    $region19: #{tpu_custom_call.1} parent=1 // pred_check_branch
      %932 = sbr.rel (0) target = $region21
    $region20: #{tpu_custom_call.1} parent=1 // pred_region
      _
    $region21: #{tpu_custom_call.1} parent=1 // pred_fallthru
      _
    // Predicated region
    $region22: #{tpu_custom_call.1} parent=1 // pred_check
      _
    $region23: #{tpu_custom_call.1} parent=1 // pred_check_branch
      %934 = sbr.rel (0) target = $region25
    $region24: #{tpu_custom_call.1} parent=1 // pred_region
      _
    $region25: #{tpu_custom_call.1} parent=1 // pred_fallthru
      _
    %935 = vsyncpa [#allocation3], 1

</llo_original>
